<compile_context>
chip_gen: v7x
topology: tpu7x:2x2x1
jax: 0.10.0
libtpu: 0.0.40
codegen_flags: <defaults>
</compile_context>

<pallas_src>
import jax
import jax.numpy as jnp
from jax.experimental import pallas as pl
from jax.experimental.pallas import tpu as pltpu


# ----------------------------------------------------------------------------
# helpers
# ----------------------------------------------------------------------------
def _round_up(n, m):
    return ((n + m - 1) // m) * m


def _pad_to(x, shape):
    pads = [(0, s - d) for d, s in zip(x.shape, shape)]
    return jnp.pad(x, pads)


def _byte_size(x):
    return int(x.size) * x.dtype.itemsize


# ----------------------------------------------------------------------------
# Pallas kernels
# ----------------------------------------------------------------------------
def energy_kernel(enc_ref, w_attn_ref, b_attn_ref, energy_t_ref):
    """Step-invariant attention energy, stored pre-transposed: (Hg, Sp) bf16."""
    e = jnp.dot(enc_ref[...], w_attn_ref[...], preferred_element_type=jnp.float32)
    e = e + b_attn_ref[...]
    energy_t_ref[...] = e.T.astype(energy_t_ref.dtype)


def decode_kernel(ids_ref,                       # scalar-prefetch token ids (drives emb gather)
                  emb_ref, lctx_ref, lhid_ref, enc_ref, energy_t_ref, sbias_ref,
                  w_gru_ref, b_gru_ref, w_out_ref, b_out_ref,
                  logp_ref, ctx_out_ref, hid_out_ref, attnw_ref,
                  hid_state, ctx_state):
    f32 = jnp.float32
    bf = jnp.bfloat16
    Hg = ctx_state.shape[1]
    L = hid_state.shape[0]
    step = pl.program_id(0)

    # carry initialization (hidden / context live in VMEM scratch across steps)
    @pl.when(step == 0)
    def _():
        hid_state[...] = lhid_ref[...]
        ctx_state[...] = lctx_ref[...]

    x_b = emb_ref[0]                                       # (1, Hg) bf16, gathered row
    ctx_b = ctx_state[...].astype(bf)                      # (1, Hg) bf16

    # --- GRU stack: ONE fused matmul per layer (LHS = [x | ctx | h_prev]) ---
    # combined weight columns: [r_i+r_h | z_i+z_h | n_input | n_hidden]
    h_top = None
    for l in range(L):                                     # static unroll over layers
        h_prev = hid_state[pl.ds(l, 1), :]                 # (1, Hg) f32
        lhs = jnp.concatenate([x_b, ctx_b, h_prev.astype(bf)], axis=1)   # (1, 3*Hg)
        g = jnp.dot(lhs, w_gru_ref[l], preferred_element_type=f32)
        g = g + b_gru_ref[pl.ds(l, 1), :]                  # (1, 4*Hg) f32
        r = jax.nn.sigmoid(g[:, 0:Hg])
        z = jax.nn.sigmoid(g[:, Hg:2 * Hg])
        n = jnp.tanh(g[:, 2 * Hg:3 * Hg] + r * g[:, 3 * Hg:4 * Hg])
        h_new = (1.0 - z) * n + z * h_prev                 # pad lanes stay exactly 0
        hid_state[pl.ds(l, 1), :] = h_new
        x_b = h_new.astype(bf)
        h_top = h_new

    hid_out_ref[0] = hid_state[...]                        # per-step hidden output

    # --- attention: scores = rnn_out @ energy_T (+ pad mask), softmax ---
    rnn_b = h_top.astype(bf)                               # (1, Hg)
    scores = (jnp.dot(rnn_b, energy_t_ref[...], preferred_element_type=f32)
              + sbias_ref[...])                            # (1, Sp); pads = -1e30
    m = jnp.max(scores, axis=1, keepdims=True)
    e = jnp.exp(scores - m)
    attn_w = e / jnp.sum(e, axis=1, keepdims=True)
    attnw_ref[0] = attn_w

    # --- context = attn_weights @ encoder_outputs ---
    ctx = jnp.dot(attn_w.astype(bf), enc_ref[...], preferred_element_type=f32)
    ctx_state[...] = ctx
    ctx_out_ref[0] = ctx

    # --- fused output projection (LHS = [rnn | ctx]) + log_softmax ---
    lhs_o = jnp.concatenate([rnn_b, ctx.astype(bf)], axis=1)            # (1, 2*Hg)
    logits = (jnp.dot(lhs_o, w_out_ref[...], preferred_element_type=f32)
              + b_out_ref[...])                            # (1, Op); pad lanes = -1e30
    lm = jnp.max(logits, axis=1, keepdims=True)
    sh = logits - lm
    lse = jnp.log(jnp.sum(jnp.exp(sh), axis=1, keepdims=True))
    logp_ref[0] = sh - lse


# ----------------------------------------------------------------------------
# parameter preparation (lane-aligned, K-stacked layout)
# ----------------------------------------------------------------------------
def prepare_kernel_params(params, H, O, L):
    Hg = _round_up(H, 128)
    Op = _round_up(O, 128)
    bf = jnp.bfloat16
    f32 = jnp.float32

    def gate(w, g):   # (..., 3H) -> (..., Hg): one gate block, lane-padded with zeros
        blk = w[..., g * H:(g + 1) * H]
        return jnp.pad(blk, [(0, 0)] * (w.ndim - 1) + [(0, Hg - H)])

    def pad_rows(w):  # (H, X) -> (Hg, X)
        return jnp.pad(w, [(0, Hg - H), (0, 0)])

    emb_p = _pad_to(params["emb"], (O, Hg)).astype(bf).reshape(O, 1, Hg)

    zeros_blk = jnp.zeros((Hg, Hg), f32)
    w_layers, b_layers = [], []
    for l in range(L):
        w_x = params["w_ih0_e"] if l == 0 else params["w_ih_up"][l - 1]   # (H, 3H)
        w_h = params["w_hh"][l]                                           # (H, 3H)
        x_rows = jnp.concatenate([pad_rows(gate(w_x, 0)), pad_rows(gate(w_x, 1)),
                                  pad_rows(gate(w_x, 2)), zeros_blk], axis=1)
        if l == 0:
            w_c = params["w_ih0_c"]
            c_rows = jnp.concatenate([pad_rows(gate(w_c, 0)), pad_rows(gate(w_c, 1)),
                                      pad_rows(gate(w_c, 2)), zeros_blk], axis=1)
        else:
            c_rows = jnp.zeros((Hg, 4 * Hg), f32)
        h_rows = jnp.concatenate([pad_rows(gate(w_h, 0)), pad_rows(gate(w_h, 1)),
                                  zeros_blk, pad_rows(gate(w_h, 2))], axis=1)
        w_layers.append(jnp.concatenate([x_rows, c_rows, h_rows], axis=0))   # (3Hg, 4Hg)

        b_i, b_h = params["b_ih"][l], params["b_hh"][l]                      # (3H,)
        b_layers.append(jnp.concatenate([gate(b_i, 0) + gate(b_h, 0),
                                         gate(b_i, 1) + gate(b_h, 1),
                                         gate(b_i, 2),
                                         gate(b_h, 2)], axis=0))             # (4Hg,)
    w_gru = jnp.stack(w_layers).astype(bf)       # (L, 3Hg, 4Hg)
    b_gru = jnp.stack(b_layers).astype(f32)      # (L, 4Hg) — gate bias pads stay exactly 0

    w_attn_p = _pad_to(params["w_attn"], (Hg, Hg)).astype(bf)
    b_attn_p = _pad_to(params["b_attn"], (1, Hg)).astype(f32)

    w_out_p = jnp.concatenate([pad_rows(params["w_out"][:H]),
                               pad_rows(params["w_out"][H:])], axis=0)       # (2Hg, O)
    w_out_p = _pad_to(w_out_p, (2 * Hg, Op)).astype(bf)
    # vocab-padding mask baked into the bias pads (weight pad columns are zero)
    b_out_p = jnp.full((1, Op), -1e30, f32).at[:, :O].set(params["b_out"][0])

    return dict(emb=emb_p, w_gru=w_gru, b_gru=b_gru,
                w_attn=w_attn_p, b_attn=b_attn_p, w_out=w_out_p, b_out=b_out_p,
                H=H, O=O, L=L, Hg=Hg, Op=Op)


# ----------------------------------------------------------------------------
# per-sequence precompute (encoder padding + pre-transposed attention energy)
# ----------------------------------------------------------------------------
def precompute_encoder_state(encoder_outputs, kp):
    H, Hg = kp["H"], kp["Hg"]
    S = encoder_outputs.shape[0]
    Sp = max(_round_up(S, 128), 128)
    enc_p = _pad_to(encoder_outputs.reshape(S, H), (Sp, Hg)).astype(jnp.bfloat16)
    sbias = jnp.where(jnp.arange(Sp) < S, 0.0, -1e30).astype(jnp.float32).reshape(1, Sp)

    vmem = pl.BlockSpec(memory_space=pltpu.MemorySpace.VMEM)
    energy_t = pl.pallas_call(
        energy_kernel,
        out_shape=jax.ShapeDtypeStruct((Hg, Sp), jnp.bfloat16),
        in_specs=[vmem, vmem, vmem],
        out_specs=vmem,
    )(enc_p, kp["w_attn"], kp["b_attn"])
    return enc_p, energy_t, sbias


# ----------------------------------------------------------------------------
# fused multi-step decode (grid over time; weights resident, state in scratch)
# ----------------------------------------------------------------------------
def _decode_cost(kp, Sp, T):
    Hg, Op, L = kp["Hg"], kp["Op"], kp["L"]
    flops = T * (L * 2 * (3 * Hg) * (4 * Hg) + 2 * Hg * Sp + 2 * Sp * Hg
                 + 2 * (2 * Hg) * Op)
    trans = T * (L * 3 * Hg + Sp + Op)
    static_bytes = sum(_byte_size(kp[k]) for k in ("w_gru", "b_gru", "w_out", "b_out"))
    static_bytes += Sp * Hg * 2 * 2 + Sp * 4
    per_step = Hg * 2 + (Op + Hg + L * Hg + Sp) * 4
    return pl.CostEstimate(flops=flops, transcendentals=trans,
                           bytes_accessed=static_bytes + T * per_step)


def _decode_vmem_limit(kp, Sp):
    Hg, Op, L = kp["Hg"], kp["Op"], kp["L"]
    blocks = (Hg * 2 + (1 + L) * Hg * 4
              + Sp * Hg * 2 * 2 + Sp * 4
              + L * 3 * Hg * 4 * Hg * 2 + L * 4 * Hg * 4
              + 2 * Hg * Op * 2 + Op * 4
              + (Op + Hg + L * Hg + Sp) * 4)
    scratch = (L + 1) * Hg * 4
    need = 2 * blocks + scratch + (4 << 20)
    return int(min(max(need, 32 << 20), 64 << 20))


def attn_decoder_decode(token_ids, last_context, last_hidden, kp, encoder_state):
    """Teacher-forced fused decode of T steps in ONE pallas_call. Returns padded arrays."""
    enc_p, energy_t, sbias = encoder_state
    H, O, L, Hg, Op = kp["H"], kp["O"], kp["L"], kp["Hg"], kp["Op"]
    Sp = enc_p.shape[0]
    T = int(token_ids.shape[0])

    ids = jnp.clip(jnp.asarray(token_ids, jnp.int32).reshape((T,)), 0, O - 1)
    lctx_p = _pad_to(last_context.reshape(1, H).astype(jnp.float32), (1, Hg))
    lhid_p = _pad_to(last_hidden.reshape(L, H).astype(jnp.float32), (L, Hg))

    grid_spec = pltpu.PrefetchScalarGridSpec(
        num_scalar_prefetch=1,
        grid=(T,),
        in_specs=[
            pl.BlockSpec((1, 1, Hg), lambda i, ids: (ids[i], 0, 0)),        # emb row gather
            pl.BlockSpec((1, Hg), lambda i, ids: (0, 0)),                   # initial context
            pl.BlockSpec((L, Hg), lambda i, ids: (0, 0)),                   # initial hidden
            pl.BlockSpec((Sp, Hg), lambda i, ids: (0, 0)),                  # encoder outputs
            pl.BlockSpec((Hg, Sp), lambda i, ids: (0, 0)),                  # energy (transposed)
            pl.BlockSpec((1, Sp), lambda i, ids: (0, 0)),                   # attention pad mask
            pl.BlockSpec((L, 3 * Hg, 4 * Hg), lambda i, ids: (0, 0, 0)),    # fused GRU weights
            pl.BlockSpec((L, 4 * Hg), lambda i, ids: (0, 0)),               # fused GRU biases
            pl.BlockSpec((2 * Hg, Op), lambda i, ids: (0, 0)),              # fused output weight
            pl.BlockSpec((1, Op), lambda i, ids: (0, 0)),                   # output bias (+mask)
        ],
        out_specs=[
            pl.BlockSpec((1, 1, Op), lambda i, ids: (i, 0, 0)),             # per-step log-probs
            pl.BlockSpec((1, 1, Hg), lambda i, ids: (i, 0, 0)),             # per-step context
            pl.BlockSpec((1, L, Hg), lambda i, ids: (i, 0, 0)),             # per-step hidden
            pl.BlockSpec((1, 1, Sp), lambda i, ids: (i, 0, 0)),             # per-step attn weights
        ],
        scratch_shapes=[pltpu.VMEM((L, Hg), jnp.float32),                   # hidden carry
                        pltpu.VMEM((1, Hg), jnp.float32)],                  # context carry
    )
    out_shapes = (
        jax.ShapeDtypeStruct((T, 1, Op), jnp.float32),
        jax.ShapeDtypeStruct((T, 1, Hg), jnp.float32),
        jax.ShapeDtypeStruct((T, L, Hg), jnp.float32),
        jax.ShapeDtypeStruct((T, 1, Sp), jnp.float32),
    )

    return pl.pallas_call(
        decode_kernel,
        out_shape=out_shapes,
        grid_spec=grid_spec,
        compiler_params=pltpu.CompilerParams(
            dimension_semantics=("arbitrary",),
            vmem_limit_bytes=_decode_vmem_limit(kp, Sp)),
        cost_estimate=_decode_cost(kp, Sp, T),
    )(ids, kp["emb"], lctx_p, lhid_p, enc_p, energy_t, sbias,
      kp["w_gru"], kp["b_gru"], kp["w_out"], kp["b_out"])


def attn_decoder_forward(word_input, last_context, last_hidden, encoder_outputs,
                         kp, encoder_state=None):
    """One decode step (matches the PyTorch module's forward)."""
    if encoder_state is None:
        encoder_state = precompute_encoder_state(encoder_outputs, kp)
    H, O, L = kp["H"], kp["O"], kp["L"]
    S = encoder_outputs.shape[0]
    ids = jnp.asarray(word_input, jnp.int32).reshape((1,))
    logp, ctx, hid, attnw = attn_decoder_decode(ids, last_context, last_hidden,
                                                kp, encoder_state)
    # match PyTorch return shapes: (1,O), (1,H), (L,1,H), (1,1,S)
    return (logp[0, :, :O], ctx[0, :, :H],
            hid[0, :, :H].reshape(L, 1, H), attnw[0, :, :S].reshape(1, 1, S))


# ----------------------------------------------------------------------------
# parameters + pure-JAX reference (mirrors the kernel's bf16-matmul / f32 math)
# ----------------------------------------------------------------------------
def init_params(key, output_size, hidden, layers):
    H = hidden
    ks = jax.random.split(key, 11)
    s = 0.1
    emb = s * jax.random.normal(ks[0], (output_size, H), jnp.float32)
    w_ih0_e = s * jax.random.normal(ks[1], (H, 3 * H), jnp.float32)
    w_ih0_c = s * jax.random.normal(ks[2], (H, 3 * H), jnp.float32)
    w_ih_up = s * jax.random.normal(ks[3], (max(layers - 1, 0), H, 3 * H), jnp.float32)
    w_hh = s * jax.random.normal(ks[4], (layers, H, 3 * H), jnp.float32)
    b_ih = s * jax.random.normal(ks[5], (layers, 3 * H), jnp.float32)
    b_hh = s * jax.random.normal(ks[6], (layers, 3 * H), jnp.float32)
    w_attn = s * jax.random.normal(ks[7], (H, H), jnp.float32)
    b_attn = s * jax.random.normal(ks[8], (1, H), jnp.float32)
    w_out = s * jax.random.normal(ks[9], (2 * H, output_size), jnp.float32)
    b_out = s * jax.random.normal(ks[10], (1, output_size), jnp.float32)
    return dict(emb=emb, w_ih0_e=w_ih0_e, w_ih0_c=w_ih0_c, w_ih_up=w_ih_up,
                w_hh=w_hh, b_ih=b_ih, b_hh=b_hh, w_attn=w_attn, b_attn=b_attn,
                w_out=w_out, b_out=b_out)


def reference(word_input, last_context, last_hidden, encoder_outputs, params):
    bf, f32 = jnp.bfloat16, jnp.float32
    L, _, H = last_hidden.shape
    S = encoder_outputs.shape[0]

    x_b = params["emb"][word_input].reshape(1, H).astype(bf)
    ctx_b = last_context.astype(f32).astype(bf)
    hids = []
    for l in range(L):
        h_prev = last_hidden[l].astype(f32)
        if l == 0:
            gi = (jnp.dot(x_b, params["w_ih0_e"].astype(bf), preferred_element_type=f32)
                  + jnp.dot(ctx_b, params["w_ih0_c"].astype(bf), preferred_element_type=f32)
                  + params["b_ih"][l])
        else:
            gi = (jnp.dot(x_b, params["w_ih_up"][l - 1].astype(bf), preferred_element_type=f32)
                  + params["b_ih"][l])
        gh = (jnp.dot(h_prev.astype(bf), params["w_hh"][l].astype(bf), preferred_element_type=f32)
              + params["b_hh"][l])
        r = jax.nn.sigmoid(gi[:, :H] + gh[:, :H])
        z = jax.nn.sigmoid(gi[:, H:2 * H] + gh[:, H:2 * H])
        n = jnp.tanh(gi[:, 2 * H:] + r * gh[:, 2 * H:])
        h_new = (1.0 - z) * n + z * h_prev
        hids.append(h_new)
        x_b = h_new.astype(bf)

    rnn_out = hids[-1]
    rnn_b = rnn_out.astype(bf)
    enc = encoder_outputs.reshape(S, H)
    enc_b = enc.astype(bf)
    energy = (jnp.dot(enc_b, params["w_attn"].astype(bf), preferred_element_type=f32)
              + params["b_attn"]).astype(bf)
    scores = jnp.dot(rnn_b, energy.T, preferred_element_type=f32)
    attn_w = jax.nn.softmax(scores, axis=1)
    ctx = jnp.dot(attn_w.astype(bf), enc_b, preferred_element_type=f32)
    logits = (jnp.dot(rnn_b, params["w_out"][:H].astype(bf), preferred_element_type=f32)
              + jnp.dot(ctx.astype(bf), params["w_out"][H:].astype(bf), preferred_element_type=f32)
              + params["b_out"])
    logp = jax.nn.log_softmax(logits, axis=1)
    return logp, ctx, jnp.stack(hids).reshape(L, 1, H), attn_w.reshape(1, 1, S)


# ----------------------------------------------------------------------------
if __name__ == "__main__":
    H = 32   # hidden_size == embed_dim (required by the forward's cat shapes)
    L = 2    # hidden_layers
    O = 64   # output_size (vocab)
    S = 8    # encoder sequence length

    key = jax.random.PRNGKey(0)
    kparm, k1, k2, k3 = jax.random.split(key, 4)
    params = init_params(kparm, O, H, L)
    kp = prepare_kernel_params(params, H, O, L)

    word_input = jnp.array(3, dtype=jnp.int32)
    last_context = 0.1 * jax.random.normal(k1, (1, H), jnp.float32)
    last_hidden = 0.1 * jax.random.normal(k2, (L, 1, H), jnp.float32)
    encoder_outputs = 0.1 * jax.random.normal(k3, (S, 1, H), jnp.float32)

    # step-invariant precompute (once per source sequence)
    enc_state = precompute_encoder_state(encoder_outputs, kp)

    # --- single-step forward (matches the PyTorch module forward) ---
    outs = attn_decoder_forward(word_input, last_context, last_hidden, encoder_outputs,
                                kp, encoder_state=enc_state)
    outs = jax.block_until_ready(outs)
    refs = reference(word_input, last_context, last_hidden, encoder_outputs, params)
    names = ("log_probs", "context", "hidden", "attn_weights")
    for name, o, r in zip(names, outs, refs):
        assert o.shape == r.shape, (name, o.shape, r.shape)
        assert jnp.allclose(o, r, atol=1e-2, rtol=1e-2), (name, float(jnp.max(jnp.abs(o - r))))

    # --- fused multi-step decode (ONE pallas_call for the whole sequence) ---
    token_ids = jnp.array([3, 1, 7, 2], dtype=jnp.int32)
    logp_s, ctx_s, hid_s, attnw_s = jax.block_until_ready(
        attn_decoder_decode(token_ids, last_context, last_hidden, kp, enc_state))
    ctx_r, hid_r = last_context, last_hidden
    for t in range(int(token_ids.shape[0])):
        logp_t, ctx_r, hid_r, attnw_t = reference(token_ids[t], ctx_r, hid_r,
                                                  encoder_outputs, params)
        checks = [
            ("seq_log_probs", logp_s[t, :, :O], logp_t),
            ("seq_context", ctx_s[t, :, :H], ctx_r),
            ("seq_hidden", hid_s[t, :, :H].reshape(L, 1, H), hid_r),
            ("seq_attn", attnw_s[t, :, :S].reshape(1, 1, S), attnw_t),
        ]
        for name, o, r in checks:
            assert o.shape == r.shape, (name, t, o.shape, r.shape)
            assert jnp.allclose(o, r, atol=1e-2, rtol=1e-2), (
                name, t, float(jnp.max(jnp.abs(o - r))))

    print("KERNEL_OK")
</pallas_src>

<mosaic_0001>
module attributes {stable_mosaic.version = 11 : i64} {
  func.func @energy_kernel(%arg0: memref<128x128xbf16, #tpu.memory_space<vmem>>, %arg1: memref<128x128xbf16, #tpu.memory_space<vmem>>, %arg2: memref<1x128xf32, #tpu.memory_space<vmem>>, %arg3: memref<128x128xbf16, #tpu.memory_space<vmem>>) attributes {dimension_semantics = [], scalar_prefetch = 0 : i64, scratch_operands = 0 : i64, tpu.core_type = #tpu.core_type<tc>} {
    %c0 = arith.constant 0 : index
    %c0_0 = arith.constant 0 : index
    %0 = vector.load %arg0[%c0, %c0_0] : memref<128x128xbf16, #tpu.memory_space<vmem>>, vector<128x128xbf16>
    %c0_1 = arith.constant 0 : index
    %c0_2 = arith.constant 0 : index
    %1 = vector.load %arg1[%c0_1, %c0_2] : memref<128x128xbf16, #tpu.memory_space<vmem>>, vector<128x128xbf16>
    %cst = arith.constant dense<0.000000e+00> : vector<128x128xf32>
    %2 = tpu.matmul %0, %1, %cst {dimension_numbers = #tpu.dot_dimension_numbers<[1], [0], [0], [1], [0, 0, 1, 1], [], []>} : vector<128x128xbf16>, vector<128x128xbf16>, vector<128x128xf32> -> vector<128x128xf32>
    %c0_3 = arith.constant 0 : index
    %c0_4 = arith.constant 0 : index
    %3 = vector.load %arg2[%c0_3, %c0_4] : memref<1x128xf32, #tpu.memory_space<vmem>>, vector<1x128xf32>
    %4 = vector.broadcast %3 : vector<1x128xf32> to vector<128x128xf32>
    %5 = arith.addf %2, %4 : vector<128x128xf32>
    %6 = tpu.transpose %5, [1, 0] : vector<128x128xf32> -> vector<128x128xf32>
    %7 = arith.truncf %6 : vector<128x128xf32> to vector<128x128xbf16>
    %c0_5 = arith.constant 0 : index
    %c0_6 = arith.constant 0 : index
    %8 = vector.load %arg3[%c0_5, %c0_6] : memref<128x128xbf16, #tpu.memory_space<vmem>>, vector<128x128xbf16>
    tpu.vector_store %arg3[%c0_5, %c0_6], %7 {strides = array<i32>} : memref<128x128xbf16, #tpu.memory_space<vmem>>, vector<128x128xbf16>,
    return
  }
}

</mosaic_0001>

<llo_original>
// kernel: tpu_custom_call.1
$region0: #{tpu_custom_call.1}
  #allocation0 [shape = 'u32[]', space=smem, size = 0x4, offset = 0x4, fixed_abs, tag = 'smem constant byte address 0x4 - core index']
  #allocation1 [shape = 'u32[144,128]{1,0:T(1,128)}', space=vmem, size = 0x12000, scoped, tag = 'internal scratch']
  %s0 = inlined_call_operand.hbm [shape: bf16[128,128], index: 0, kind: input, shape index: {}]
  %s1 = inlined_call_operand.hbm [shape: bf16[128,128], index: 1, kind: input, shape index: {}]
  %s2 = inlined_call_operand.vmem [shape: f32[1,128], index: 2, kind: input, shape index: {}]
  %s3 = inlined_call_operand.hbm [shape: bf16[128,128], index: 3, kind: output, shape index: {}]
  %s4 = sld [smem:[#allocation0]]
  $region30: #{tpu_custom_call.1} parent=0
    _
  %s6 = ssub.s32 1, %s4
  %s7 = scalar_select 0, %s6, %s4
  $region1: #{tpu_custom_call.1} parent=0
    #allocation2 [shape = 'u8[32768]{0}', space=vmem, size = 0x8000, scoped, tag = 'input window, operand 0, single buffered']
    #allocation3 [shape = 's32[1]{0}', space=sflag, size = 0x4, scoped, tag = 'scoped memory for tpu_custom_call.1']
    #allocation4 [shape = 's32[1]{0}', space=sflag, size = 0x4, scoped, tag = 'scoped memory for tpu_custom_call.1']
    #allocation5 [shape = 'u8[32768]{0}', space=vmem, size = 0x8000, scoped, tag = 'input window, operand 1, single buffered']
    #allocation6 [shape = 's32[1]{0}', space=sflag, size = 0x4, scoped, tag = 'scoped memory for tpu_custom_call.1']
    #allocation7 [shape = 'u8[32768]{0}', space=vmem, size = 0x8000, scoped, tag = 'output window, operand 0, single buffered']
    %8 = vsyncpa [#allocation3], 0
    %9 = vsyncpa [#allocation6], 0
    %10 = vsyncpa [#allocation4], 0
    // Predicated region
    $region2: #{tpu_custom_call.1} parent=1 // pred_check
      _
    $region3: #{tpu_custom_call.1} parent=1 // pred_check_branch
      %12 = sbr.rel (0) target = $region5
    $region4: #{tpu_custom_call.1} parent=1 // pred_region
      %s14 = ssub.s32 1024, 1024
      %15 = vsyncadd [#allocation3], %s14
      %s16 = sshll.u32 [#allocation2], 4
      %s17 = int_to_ptr.vmem [resolvable:$true] %s16
      %22 = dma.hbm_to_vmem [thread:$0]  %s0, 1024, %s17, [#allocation3], 64, 64, 4
    $region5: #{tpu_custom_call.1} parent=1 // pred_fallthru
      _
    // Predicated region
    $region6: #{tpu_custom_call.1} parent=1 // pred_check
      _
    $region7: #{tpu_custom_call.1} parent=1 // pred_check_branch
      %24 = sbr.rel (0) target = $region9
    $region8: #{tpu_custom_call.1} parent=1 // pred_region
      %s26 = ssub.s32 1024, 1024
      %27 = vsyncadd [#allocation6], %s26
      %s28 = sshll.u32 [#allocation5], 4
      %s29 = int_to_ptr.vmem [resolvable:$true] %s28
      %34 = dma.hbm_to_vmem [thread:$0]  %s1, 1024, %s29, [#allocation6], 64, 64, 4
    $region9: #{tpu_custom_call.1} parent=1 // pred_fallthru
      _
    // Predicated region
    $region10: #{tpu_custom_call.1} parent=1 // pred_check
      _
    $region11: #{tpu_custom_call.1} parent=1 // pred_check_branch
      %36 = sbr.rel (0) target = $region13
    $region12: #{tpu_custom_call.1} parent=1 // pred_region
      _
    $region13: #{tpu_custom_call.1} parent=1 // pred_fallthru
      _
    // Predicated region
    $region14: #{tpu_custom_call.1} parent=1 // pred_check
      _
    $region15: #{tpu_custom_call.1} parent=1 // pred_check_branch
      %38 = sbr.rel (0) target = $region17
    $region16: #{tpu_custom_call.1} parent=1 // pred_region
      %39 = dma.done [#allocation3], 1024
    $region17: #{tpu_custom_call.1} parent=1 // pred_fallthru
      _
    // Predicated region
    $region18: #{tpu_custom_call.1} parent=1 // pred_check
      _
    $region19: #{tpu_custom_call.1} parent=1 // pred_check_branch
      %41 = sbr.rel (0) target = $region21
    $region20: #{tpu_custom_call.1} parent=1 // pred_region
      %42 = dma.done [#allocation6], 1024
    $region21: #{tpu_custom_call.1} parent=1 // pred_fallthru
      _
    %v44 = vld [vmem:[#allocation2] sm:$0xf]
    %v45 = vld [vmem:[#allocation2 + $0x4] sm:$0xf]
    %v46 = vld [vmem:[#allocation2 + $0x8] sm:$0xf]
    %v47 = vld [vmem:[#allocation2 + $0xc] sm:$0xf]
    %v48 = vld [vmem:[#allocation2 + $0x10] sm:$0xf]
    %v49 = vld [vmem:[#allocation2 + $0x14] sm:$0xf]
    %v50 = vld [vmem:[#allocation2 + $0x18] sm:$0xf]
    %v51 = vld [vmem:[#allocation2 + $0x1c] sm:$0xf]
    %v52 = vld [vmem:[#allocation2 + $0x20] sm:$0xf]
    %v53 = vld [vmem:[#allocation2 + $0x24] sm:$0xf]
    %v54 = vld [vmem:[#allocation2 + $0x28] sm:$0xf]
    %v55 = vld [vmem:[#allocation2 + $0x2c] sm:$0xf]
    %v56 = vld [vmem:[#allocation2 + $0x30] sm:$0xf]
    %v57 = vld [vmem:[#allocation2 + $0x34] sm:$0xf]
    %v58 = vld [vmem:[#allocation2 + $0x38] sm:$0xf]
    %v59 = vld [vmem:[#allocation2 + $0x3c] sm:$0xf]
    %v60 = vld [vmem:[#allocation5] sm:$0xf]
    %v61 = vld [vmem:[#allocation5 + $0x4] sm:$0xf]
    %v62 = vld [vmem:[#allocation5 + $0x8] sm:$0xf]
    %v63 = vld [vmem:[#allocation5 + $0xc] sm:$0xf]
    %v64 = vld [vmem:[#allocation5 + $0x10] sm:$0xf]
    %v65 = vld [vmem:[#allocation5 + $0x14] sm:$0xf]
    %v66 = vld [vmem:[#allocation5 + $0x18] sm:$0xf]
    %v67 = vld [vmem:[#allocation5 + $0x1c] sm:$0xf]
    %v68 = vld [vmem:[#allocation5 + $0x20] sm:$0xf]
    %v69 = vld [vmem:[#allocation5 + $0x24] sm:$0xf]
    %v70 = vld [vmem:[#allocation5 + $0x28] sm:$0xf]
    %v71 = vld [vmem:[#allocation5 + $0x2c] sm:$0xf]
    %v72 = vld [vmem:[#allocation5 + $0x30] sm:$0xf]
    %v73 = vld [vmem:[#allocation5 + $0x34] sm:$0xf]
    %v74 = vld [vmem:[#allocation5 + $0x38] sm:$0xf]
    %v75 = vld [vmem:[#allocation5 + $0x3c] sm:$0xf]
    %v76 = vld [vmem:[%s2] sm:$0x1]
    %v78 = vlaneseq
    %v79 = vshrl.u32 %v78, 7
    %v80 = vsub.s32 0, %v79
    %v81 = vrot.slane %v76, %v80
    %v99 = vunpack.c.l.b16 %v44
    %v100 = vunpack.c.l.b16 %v45
    %v101 = vunpack.c.l.b16 %v46
    %v102 = vunpack.c.l.b16 %v47
    %v103 = vunpack.c.l.b16 %v48
    %v104 = vunpack.c.l.b16 %v49
    %v105 = vunpack.c.l.b16 %v50
    %v106 = vunpack.c.l.b16 %v51
    %v107 = vunpack.c.l.b16 %v52
    %v108 = vunpack.c.l.b16 %v53
    %v109 = vunpack.c.l.b16 %v54
    %v110 = vunpack.c.l.b16 %v55
    %v111 = vunpack.c.l.b16 %v56
    %v112 = vunpack.c.l.b16 %v57
    %v113 = vunpack.c.l.b16 %v58
    %v114 = vunpack.c.l.b16 %v59
    %v115 = vpack.c.b16 %v100, %v99
    %v116 = vpack.c.b16 %v102, %v101
    %v117 = vpack.c.b16 %v104, %v103
    %v118 = vpack.c.b16 %v106, %v105
    %v119 = vpack.c.b16 %v108, %v107
    %v120 = vpack.c.b16 %v110, %v109
    %v121 = vpack.c.b16 %v112, %v111
    %v122 = vpack.c.b16 %v114, %v113
    %v147 = vunpack.c.l.b16 %v60
    %v148 = vunpack.c.l.b16 %v61
    %v149 = vunpack.c.l.b16 %v62
    %v150 = vunpack.c.l.b16 %v63
    %v151 = vunpack.c.l.b16 %v64
    %v152 = vunpack.c.l.b16 %v65
    %v153 = vunpack.c.l.b16 %v66
    %v154 = vunpack.c.l.b16 %v67
    %v155 = vunpack.c.l.b16 %v68
    %v156 = vunpack.c.l.b16 %v69
    %v157 = vunpack.c.l.b16 %v70
    %v158 = vunpack.c.l.b16 %v71
    %v159 = vunpack.c.l.b16 %v72
    %v160 = vunpack.c.l.b16 %v73
    %v161 = vunpack.c.l.b16 %v74
    %v162 = vunpack.c.l.b16 %v75
    %v163 = vpack.c.b16 %v148, %v147
    %v164 = vpack.c.b16 %v150, %v149
    %v165 = vpack.c.b16 %v152, %v151
    %v166 = vpack.c.b16 %v154, %v153
    %v167 = vpack.c.b16 %v156, %v155
    %v168 = vpack.c.b16 %v158, %v157
    %v169 = vpack.c.b16 %v160, %v159
    %v170 = vpack.c.b16 %v162, %v161
    %179 = vmatprep.subr.bf16.mxu0 0
    %180 = vmatpush1.bf16.msra.mxu0 %v163
    %181 = vmatprep.subr.bf16.mxu0 0
    %182 = vmatpush1.bf16.msra.mxu0 %v164
    %183 = vmatprep.subr.bf16.mxu0 0
    %184 = vmatpush1.bf16.msra.mxu0 %v165
    %185 = vmatprep.subr.bf16.mxu0 0
    %186 = vmatpush1.bf16.msra.mxu0 %v166
    %187 = vmatprep.subr.bf16.mxu0 0
    %188 = vmatpush1.bf16.msra.mxu0 %v167
    %189 = vmatprep.subr.bf16.mxu0 0
    %190 = vmatpush1.bf16.msra.mxu0 %v168
    %191 = vmatprep.subr.bf16.mxu0 0
    %192 = vmatpush1.bf16.msra.mxu0 %v169
    %193 = vmatprep.subr.bf16.mxu0 0
    %194 = vmatpush1.bf16.msra.mxu0 %v170
    %195 = vmatprep.subr.bf16.mxu0 0
    %196 = vmatpush1.bf16.msra.mxu0 0
    %197 = vmatprep.subr.bf16.mxu0 0
    %198 = vmatpush1.bf16.msra.mxu0 0
    %199 = vmatprep.subr.bf16.mxu0 0
    %200 = vmatpush1.bf16.msra.mxu0 0
    %201 = vmatprep.subr.bf16.mxu0 0
    %202 = vmatpush1.bf16.msra.mxu0 0
    %203 = vmatprep.subr.bf16.mxu0 0
    %204 = vmatpush1.bf16.msra.mxu0 0
    %205 = vmatprep.subr.bf16.mxu0 0
    %206 = vmatpush1.bf16.msra.mxu0 0
    %207 = vmatprep.subr.bf16.mxu0 0
    %208 = vmatpush1.bf16.msra.mxu0 0
    %209 = vmatprep.subr.bf16.mxu0 0
    %210 = vmatpush1.bf16.msra.mxu0 0
    %211 = vmatprep.mubr.bf16.mxu0 0
    %212 = vmatmul.mubr.bf16.gmra.mrb[0].mxu0 %v115
    %v213 = vpop.f32.mrb[0].mxu0
    %v214 = vadd.f32 %v81, %v213
    %v215 = vpop.f32.mrb[0].mxu0
    %v216 = vpop.f32.mrb[0].mxu0
    %v217 = vadd.f32 %v81, %v216
    %v218 = vpop.f32.mrb[0].mxu0
    %219 = vmatprep.mubr.bf16.mxu0 0
    %220 = vmatmul.mubr.bf16.gmra.mrb[0].mxu0 %v116
    %v221 = vpop.f32.mrb[0].mxu0
    %v222 = vadd.f32 %v81, %v221
    %v223 = vpop.f32.mrb[0].mxu0
    %v224 = vpop.f32.mrb[0].mxu0
    %v225 = vadd.f32 %v81, %v224
    %v226 = vpop.f32.mrb[0].mxu0
    %227 = vmatprep.mubr.bf16.mxu0 0
    %228 = vmatmul.mubr.bf16.gmra.mrb[0].mxu0 %v117
    %v229 = vpop.f32.mrb[0].mxu0
    %v230 = vadd.f32 %v81, %v229
    %v231 = vpop.f32.mrb[0].mxu0
    %v232 = vpop.f32.mrb[0].mxu0
    %v233 = vadd.f32 %v81, %v232
    %v234 = vpop.f32.mrb[0].mxu0
    %235 = vmatprep.mubr.bf16.mxu0 0
    %236 = vmatmul.mubr.bf16.gmra.mrb[0].mxu0 %v118
    %v237 = vpop.f32.mrb[0].mxu0
    %v238 = vadd.f32 %v81, %v237
    %v239 = vpop.f32.mrb[0].mxu0
    %v240 = vpop.f32.mrb[0].mxu0
    %v241 = vadd.f32 %v81, %v240
    %v242 = vpop.f32.mrb[0].mxu0
    %243 = vmatprep.mubr.bf16.mxu0 0
    %244 = vmatmul.mubr.bf16.gmra.mrb[0].mxu0 %v119
    %v245 = vpop.f32.mrb[0].mxu0
    %v246 = vadd.f32 %v81, %v245
    %v247 = vpop.f32.mrb[0].mxu0
    %v248 = vpop.f32.mrb[0].mxu0
    %v249 = vadd.f32 %v81, %v248
    %v250 = vpop.f32.mrb[0].mxu0
    %251 = vmatprep.mubr.bf16.mxu0 0
    %252 = vmatmul.mubr.bf16.gmra.mrb[0].mxu0 %v120
    %v253 = vpop.f32.mrb[0].mxu0
    %v254 = vadd.f32 %v81, %v253
    %v255 = vpop.f32.mrb[0].mxu0
    %v256 = vpop.f32.mrb[0].mxu0
    %v257 = vadd.f32 %v81, %v256
    %v258 = vpop.f32.mrb[0].mxu0
    %259 = vmatprep.mubr.bf16.mxu0 0
    %260 = vmatmul.mubr.bf16.gmra.mrb[0].mxu0 %v121
    %v261 = vpop.f32.mrb[0].mxu0
    %v262 = vadd.f32 %v81, %v261
    %v263 = vpop.f32.mrb[0].mxu0
    %v264 = vpop.f32.mrb[0].mxu0
    %v265 = vadd.f32 %v81, %v264
    %v266 = vpop.f32.mrb[0].mxu0
    %267 = vmatprep.mubr.bf16.mxu0 0
    %268 = vmatmul.mubr.bf16.gmra.mrb[0].mxu0 %v122
    %v269 = vpop.f32.mrb[0].mxu0
    %v270 = vadd.f32 %v81, %v269
    %v271 = vpop.f32.mrb[0].mxu0
    %v272 = vpop.f32.mrb[0].mxu0
    %v273 = vadd.f32 %v81, %v272
    %v274 = vpop.f32.mrb[0].mxu0
    %275 = vdwg.mxu0
    %276 = vxpose.xlu0.b32.start [1/16] %v214, 128
    %277 = vxpose.xlu0.b32.cont [2/16] %v217, 128
    %278 = vxpose.xlu0.b32.cont [3/16] %v222, 128
    %279 = vxpose.xlu0.b32.cont [4/16] %v225, 128
    %280 = vxpose.xlu0.b32.cont [5/16] %v230, 128
    %281 = vxpose.xlu0.b32.cont [6/16] %v233, 128
    %282 = vxpose.xlu0.b32.cont [7/16] %v238, 128
    %283 = vxpose.xlu0.b32.cont [8/16] %v241, 128
    %284 = vxpose.xlu0.b32.cont [9/16] %v246, 128
    %285 = vxpose.xlu0.b32.cont [10/16] %v249, 128
    %286 = vxpose.xlu0.b32.cont [11/16] %v254, 128
    %287 = vxpose.xlu0.b32.cont [12/16] %v257, 128
    %288 = vxpose.xlu0.b32.cont [13/16] %v262, 128
    %289 = vxpose.xlu0.b32.cont [14/16] %v265, 128
    %290 = vxpose.xlu0.b32.cont [15/16] %v270, 128
    %291 = vxpose.xlu0.b32.end [16/16] %v273, 128
    %v292 = vpop.trf.xlu0
    %v293 = vpop.trf.xlu0
    %v294 = vpop.trf.xlu0
    %v295 = vpop.trf.xlu0
    %v296 = vpop.trf.xlu0
    %v297 = vpop.trf.xlu0
    %v298 = vpop.trf.xlu0
    %v299 = vpop.trf.xlu0
    %v300 = vpop.trf.xlu0
    %v301 = vpop.trf.xlu0
    %v302 = vpop.trf.xlu0
    %v303 = vpop.trf.xlu0
    %v304 = vpop.trf.xlu0
    %v305 = vpop.trf.xlu0
    %v306 = vpop.trf.xlu0
    %v307 = vpop.trf.xlu0
    %v308 = vpack.c.bf16 %v293, %v292
    %v309 = vpack.c.bf16 %v295, %v294
    %v310 = vpack.c.bf16 %v297, %v296
    %v311 = vpack.c.bf16 %v299, %v298
    %v312 = vpack.c.bf16 %v301, %v300
    %v313 = vpack.c.bf16 %v303, %v302
    %v314 = vpack.c.bf16 %v305, %v304
    %v315 = vpack.c.bf16 %v307, %v306
    %v324 = vunpack.c.l.b16 %v308
    %v325 = vunpack.c.h.b16 %v308
    %v326 = vunpack.c.l.b16 %v309
    %v327 = vunpack.c.h.b16 %v309
    %v328 = vunpack.c.l.b16 %v310
    %v329 = vunpack.c.h.b16 %v310
    %v330 = vunpack.c.l.b16 %v311
    %v331 = vunpack.c.h.b16 %v311
    %v332 = vunpack.c.l.b16 %v312
    %v333 = vunpack.c.h.b16 %v312
    %v334 = vunpack.c.l.b16 %v313
    %v335 = vunpack.c.h.b16 %v313
    %v336 = vunpack.c.l.b16 %v314
    %v337 = vunpack.c.h.b16 %v314
    %v338 = vunpack.c.l.b16 %v315
    %v339 = vunpack.c.h.b16 %v315
    %v340 = vpack.c.b16 %v324, %v324
    %v341 = vpack.c.b16 %v325, %v325
    %v342 = vpack.c.b16 %v326, %v326
    %v343 = vpack.c.b16 %v327, %v327
    %v344 = vpack.c.b16 %v328, %v328
    %v345 = vpack.c.b16 %v329, %v329
    %v346 = vpack.c.b16 %v330, %v330
    %v347 = vpack.c.b16 %v331, %v331
    %v348 = vpack.c.b16 %v332, %v332
    %v349 = vpack.c.b16 %v333, %v333
    %v350 = vpack.c.b16 %v334, %v334
    %v351 = vpack.c.b16 %v335, %v335
    %v352 = vpack.c.b16 %v336, %v336
    %v353 = vpack.c.b16 %v337, %v337
    %v354 = vpack.c.b16 %v338, %v338
    %v355 = vpack.c.b16 %v339, %v339
    %372 = vst [vmem:[#allocation7] sm:$0xf] %v340
    %373 = vst [vmem:[#allocation7 + $0x4] sm:$0xf] %v341
    %374 = vst [vmem:[#allocation7 + $0x8] sm:$0xf] %v342
    %375 = vst [vmem:[#allocation7 + $0xc] sm:$0xf] %v343
    %376 = vst [vmem:[#allocation7 + $0x10] sm:$0xf] %v344
    %377 = vst [vmem:[#allocation7 + $0x14] sm:$0xf] %v345
    %378 = vst [vmem:[#allocation7 + $0x18] sm:$0xf] %v346
    %379 = vst [vmem:[#allocation7 + $0x1c] sm:$0xf] %v347
    %380 = vst [vmem:[#allocation7 + $0x20] sm:$0xf] %v348
    %381 = vst [vmem:[#allocation7 + $0x24] sm:$0xf] %v349
    %382 = vst [vmem:[#allocation7 + $0x28] sm:$0xf] %v350
    %383 = vst [vmem:[#allocation7 + $0x2c] sm:$0xf] %v351
    %384 = vst [vmem:[#allocation7 + $0x30] sm:$0xf] %v352
    %385 = vst [vmem:[#allocation7 + $0x34] sm:$0xf] %v353
    %386 = vst [vmem:[#allocation7 + $0x38] sm:$0xf] %v354
    %387 = vst [vmem:[#allocation7 + $0x3c] sm:$0xf] %v355
    // Predicated region
    $region22: #{tpu_custom_call.1} parent=1 // pred_check
      _
    $region23: #{tpu_custom_call.1} parent=1 // pred_check_branch
      %389 = sbr.rel (0) target = $region25
    $region24: #{tpu_custom_call.1} parent=1 // pred_region
      %s391 = ssub.s32 1024, 1024
      %392 = vsyncadd [#allocation4], %s391
      %s393 = sshll.u32 [#allocation7], 4
      %s394 = int_to_ptr.vmem [resolvable:$true] %s393
      %399 = dma.vmem_to_hbm [thread:$0]  %s394, 1024, %s3, [#allocation4], 64, 64, 4
    $region25: #{tpu_custom_call.1} parent=1 // pred_fallthru
      _
    // Predicated region
    $region26: #{tpu_custom_call.1} parent=1 // pred_check
      _
    $region27: #{tpu_custom_call.1} parent=1 // pred_check_branch
      %401 = sbr.rel (0) target = $region29
    $region28: #{tpu_custom_call.1} parent=1 // pred_region
      %402 = dma.done [#allocation4], 1024
    $region29: #{tpu_custom_call.1} parent=1 // pred_fallthru
      _
    %403 = vsyncpa [#allocation3], 1
    %404 = vsyncpa [#allocation6], 1
    %405 = vsyncpa [#allocation4], 1

</llo_original>
